<compile_context>
chip_gen: v7x
topology: tpu7x:2x2x1
jax: 0.10.0
libtpu: 0.0.40
codegen_flags: <defaults>
</compile_context>

<pallas_src>
import functools

import jax
import jax.numpy as jnp
from jax import lax
from jax.experimental import pallas as pl
from jax.experimental.pallas import tpu as pltpu

_MiB = 1024 * 1024


def _row_alignment(dtype) -> int:
    """Sublane packing for the dtype (f32 -> 8, bf16 -> 16, int8/fp8 -> 32)."""
    itemsize = jnp.dtype(dtype).itemsize
    if itemsize >= 4:
        return 8
    if itemsize == 2:
        return 16
    return 32


def _vmem_capacity_bytes() -> int:
    """Physical VMEM per TensorCore; conservative fallback if query fails."""
    try:
        return int(pltpu.get_tpu_info().vmem_capacity_bytes)
    except Exception:
        try:
            kind = jax.devices()[0].device_kind.lower()
        except Exception:
            kind = ""
        # v7x: 64 MiB per TC; v5e/v6e: 128 MiB. Unknown -> assume small.
        return 64 * _MiB if "v7" in kind else 128 * _MiB


def _supports_native_bf16_valu() -> bool:
    """bf16 VALU exists on v6e/v7x but not v5e (or older)."""
    try:
        kind = jax.devices()[0].device_kind.lower()
    except Exception:
        return False
    return ("v6" in kind) or ("v7" in kind)


def _rms_norm_kernel(*refs, partial_size, dimension, eps, has_bias, scale_in_native):
    if has_bias:
        x_ref, gain_ref, bias_ref, o_ref = refs
    else:
        x_ref, gain_ref, o_ref = refs
        bias_ref = None

    x = x_ref[...]                                   # (tm, D) native dtype
    x_f32 = x.astype(jnp.float32)                    # f32 for the reduce

    if partial_size == dimension:
        sumsq = jnp.sum(x_f32 * x_f32, axis=-1, keepdims=True)      # (tm, 1)
    else:
        # (1, D) lane index; jnp.where broadcasts it over the rows.
        lane = lax.broadcasted_iota(jnp.int32, (1, dimension), 1)
        xm = jnp.where(lane < partial_size, x_f32, 0.0)
        sumsq = jnp.sum(xm * xm, axis=-1, keepdims=True)

    rms = jnp.sqrt(sumsq) * (1.0 / (partial_size ** 0.5))           # (tm, 1)
    # NOTE: eps is added AFTER the sqrt to match the reference numerics.
    inv = pl.reciprocal(rms + eps, approx=False)                    # per-row (EUP)

    if scale_in_native:
        # bf16 VALU path (v6e/v7x): avoid keeping a full (tm, D) f32 tile live.
        y = x * inv.astype(x.dtype) * gain_ref[...].astype(x.dtype)
        if has_bias:
            y = y + bias_ref[...].astype(x.dtype)
    else:
        y = x_f32 * inv * gain_ref[...].astype(jnp.float32)
        if has_bias:
            y = y + bias_ref[...].astype(jnp.float32)
    o_ref[...] = y.astype(o_ref.dtype)


def rms_norm(x, gain, bias=None, *, p=-1.0, eps=1e-8, block_rows=None):
    """Pallas RMSNorm. x: (..., D); gain/bias: (D,)."""
    dimension = x.shape[-1]
    assert gain.shape == (dimension,)
    if p < 0.0 or p > 1.0:
        partial_size = dimension
    else:
        partial_size = int(dimension * p)
    assert partial_size > 0, "partial_size must be > 0 (p too small for this dimension)"

    lead_shape = x.shape[:-1]
    rows = 1
    for s in lead_shape:
        rows *= s
    x2 = x.reshape(rows, dimension)

    itemsize = jnp.dtype(x.dtype).itemsize
    align = _row_alignment(x.dtype)
    rows_aligned = ((rows + align - 1) // align) * align

    # Compute path: keep the scale in the native dtype only for sub-32-bit
    # floats on chips with a bf16 VALU (v6e/v7x). f32 inputs / v5e use f32.
    scale_in_native = (
        itemsize < 4
        and jnp.issubdtype(x.dtype, jnp.floating)
        and _supports_native_bf16_valu()
    )

    # --- VMEM budget: per chip, and accounting for in-kernel f32 temps. ---
    vmem_cap = _vmem_capacity_bytes()
    if vmem_cap <= 64 * _MiB:           # v7x-class: 64 MiB physical per TC
        vmem_limit = 40 * _MiB
        vmem_budget = 16 * _MiB
    else:                               # v5e/v6e: 128 MiB physical
        vmem_limit = 64 * _MiB
        vmem_budget = 32 * _MiB

    # Per row: 2x double-buffered input tile + 2x double-buffered output tile
    # (4 * itemsize * D) plus the in-kernel f32 temporaries: ~8 bytes/elem when
    # the scale path runs in f32 (f32 copy of x + f32 y), ~4 bytes/elem when
    # only the sum-of-squares reduce is promoted.
    f32_temp_bytes = 4 if scale_in_native else 8
    per_row_bytes = dimension * (4 * itemsize + f32_temp_bytes)

    if block_rows is None:
        tm = vmem_budget // per_row_bytes
        tm = max(align, min(1024, tm))
    else:
        tm = max(align, block_rows)
    tm = (tm // align) * align

    # Keep at least 4 grid blocks when the input is big enough: feeds both
    # TensorCores on v7x (dimension_semantics="parallel") and keeps the DMA
    # pipeline overlapped with compute.
    min_blocks = 4
    blocks_cap = (rows_aligned // min_blocks // align) * align
    if block_rows is None and blocks_cap >= align:
        tm = min(tm, blocks_cap)
    tm = min(tm, rows_aligned)

    grid = (pl.cdiv(rows, tm),)

    has_bias = bias is not None
    gain2 = gain.reshape(1, dimension)

    args = [x2, gain2]
    in_specs = [
        pl.BlockSpec((tm, dimension), lambda i: (i, 0)),
        pl.BlockSpec((1, dimension), lambda i: (0, 0)),
    ]
    if has_bias:
        args.append(bias.reshape(1, dimension))
        in_specs.append(pl.BlockSpec((1, dimension), lambda i: (0, 0)))

    kernel = functools.partial(
        _rms_norm_kernel,
        partial_size=partial_size,
        dimension=dimension,
        eps=eps,
        has_bias=has_bias,
        scale_in_native=scale_in_native,
    )

    bytes_accessed = (
        2 * rows * dimension * itemsize
        + (2 if has_bias else 1) * dimension * jnp.dtype(gain.dtype).itemsize
    )
    cost = pl.CostEstimate(
        flops=4 * rows * dimension,
        transcendentals=2 * rows,
        bytes_accessed=bytes_accessed,
    )

    out = pl.pallas_call(
        kernel,
        out_shape=jax.ShapeDtypeStruct((rows, dimension), x.dtype),
        grid_spec=pltpu.PrefetchScalarGridSpec(
            num_scalar_prefetch=0,
            grid=grid,
            in_specs=in_specs,
            out_specs=pl.BlockSpec((tm, dimension), lambda i: (i, 0)),
        ),
        compiler_params=pltpu.CompilerParams(
            dimension_semantics=("parallel",),
            vmem_limit_bytes=vmem_limit,
        ),
        cost_estimate=cost,
    )(*args)

    return out.reshape(*lead_shape, dimension)


def rms_norm_ref(x, gain, bias=None, *, p=-1.0, eps=1e-8):
    """Pure-JAX reference mirroring the PyTorch forward."""
    dimension = x.shape[-1]
    if p < 0.0 or p > 1.0:
        partial = x
        partial_size = dimension
    else:
        partial_size = int(dimension * p)
        partial = x[..., :partial_size]
    norm = jnp.linalg.norm(partial.astype(jnp.float32), axis=-1, keepdims=True)
    rms = norm / (partial_size ** 0.5)
    normed = x.astype(jnp.float32) / (rms + eps)
    y = gain.astype(jnp.float32) * normed
    if bias is not None:
        y = y + bias.astype(jnp.float32)
    return y.astype(x.dtype)


if __name__ == "__main__":
    key = jax.random.PRNGKey(0)
    batch, seq, hidden = 2, 8, 32

    k_x, k_b, k_r = jax.random.split(key, 3)
    x = jax.random.normal(k_x, (batch, seq, hidden), dtype=jnp.float32)
    # Parameter init matching nn.Parameter(torch.ones/zeros(dimension)).
    gain = jnp.ones((hidden,), dtype=jnp.float32)

    # 1) Default module config: bias=False, p=-1 (full RMS), dropout off.
    y = jax.block_until_ready(rms_norm(x, gain, None, p=-1.0, eps=1e-8))
    y_ref = rms_norm_ref(x, gain, None, p=-1.0, eps=1e-8)
    assert y.shape == x.shape and y.dtype == x.dtype
    assert jnp.allclose(y, y_ref, atol=1e-5, rtol=1e-5), "mismatch vs reference (default)"

    # 2) Bias + partial-RMS path.
    bias = jax.random.normal(k_b, (hidden,), dtype=jnp.float32) * 0.1
    y2 = jax.block_until_ready(rms_norm(x, gain, bias, p=0.5, eps=1e-8))
    y2_ref = rms_norm_ref(x, gain, bias, p=0.5, eps=1e-8)
    assert jnp.allclose(y2, y2_ref, atol=1e-5, rtol=1e-5), "mismatch vs reference (bias+partial)"

    # 3) Ragged last block (rows % tm != 0) to lock in partial-block writeback.
    xr = jax.random.normal(k_r, (3, 5, hidden), dtype=jnp.float32)  # rows = 15
    y3 = jax.block_until_ready(rms_norm(xr, gain, None, p=-1.0, eps=1e-8, block_rows=8))
    y3_ref = rms_norm_ref(xr, gain, None, p=-1.0, eps=1e-8)
    assert jnp.allclose(y3, y3_ref, atol=1e-5, rtol=1e-5), "mismatch vs reference (ragged)"

    # 4) bf16 input (exercises native-dtype scale path on v6e/v7x).
    xb = x.astype(jnp.bfloat16)
    gb = gain.astype(jnp.bfloat16)
    y4 = jax.block_until_ready(rms_norm(xb, gb, None, p=-1.0, eps=1e-8))
    y4_ref = rms_norm_ref(xb, gb, None, p=-1.0, eps=1e-8)
    assert y4.dtype == jnp.bfloat16
    assert jnp.allclose(
        y4.astype(jnp.float32), y4_ref.astype(jnp.float32), atol=5e-2, rtol=5e-2
    ), "mismatch vs reference (bf16)"

    print("KERNEL_OK")
</pallas_src>

<mosaic_0001>
module attributes {stable_mosaic.version = 11 : i64} {
  func.func @_rms_norm_kernel(%arg0: i32, %arg1: memref<16x32xf32, #tpu.memory_space<vmem>>, %arg2: memref<1x32xf32, #tpu.memory_space<vmem>>, %arg3: memref<16x32xf32, #tpu.memory_space<vmem>>) attributes {dimension_semantics = [#tpu.dimension_semantics<parallel>], iteration_bounds = array<i64: 1>, scalar_prefetch = 0 : i64, scratch_operands = 0 : i64, tpu.core_type = #tpu.core_type<tc>, window_params = [{transform_indices = @transform_0, window_bounds = array<i64: 16, 32>}, {pipeline_mode = #tpu.pipeline_mode<synchronous>, transform_indices = @transform_1, window_bounds = array<i64: 1, 32>}, {transform_indices = @transform_2, window_bounds = array<i64: 16, 32>}]} {
    %c0 = arith.constant 0 : index
    %c0_0 = arith.constant 0 : index
    %0 = vector.load %arg1[%c0, %c0_0] : memref<16x32xf32, #tpu.memory_space<vmem>>, vector<16x32xf32>
    %1 = arith.mulf %0, %0 : vector<16x32xf32>
    %cst = arith.constant dense<0.000000e+00> : vector<16xf32>
    %2 = vector.multi_reduction <add>, %1, %cst [1] : vector<16x32xf32> to vector<16xf32>
    %3 = vector.shape_cast %2 : vector<16xf32> to vector<16x1xf32>
    %4 = math.sqrt %3 : vector<16x1xf32>
    %cst_1 = arith.constant 0.176776692 : f32
    %5 = vector.broadcast %cst_1 : f32 to vector<16x1xf32>
    %6 = arith.mulf %4, %5 : vector<16x1xf32>
    %cst_2 = arith.constant 9.99999993E-9 : f32
    %7 = vector.broadcast %cst_2 : f32 to vector<16x1xf32>
    %8 = arith.addf %6, %7 : vector<16x1xf32>
    %9 = tpu.reciprocal %8 : vector<16x1xf32> -> vector<16x1xf32>
    %10 = vector.broadcast %9 : vector<16x1xf32> to vector<16x32xf32>
    %11 = arith.mulf %0, %10 : vector<16x32xf32>
    %c0_3 = arith.constant 0 : index
    %c0_4 = arith.constant 0 : index
    %12 = vector.load %arg2[%c0_3, %c0_4] : memref<1x32xf32, #tpu.memory_space<vmem>>, vector<1x32xf32>
    %13 = vector.broadcast %12 : vector<1x32xf32> to vector<16x32xf32>
    %14 = arith.mulf %11, %13 : vector<16x32xf32>
    %c0_5 = arith.constant 0 : index
    %c0_6 = arith.constant 0 : index
    %15 = vector.load %arg3[%c0_5, %c0_6] : memref<16x32xf32, #tpu.memory_space<vmem>>, vector<16x32xf32>
    tpu.vector_store %arg3[%c0_5, %c0_6], %14 {strides = array<i32>} : memref<16x32xf32, #tpu.memory_space<vmem>>, vector<16x32xf32>,
    return
  }
  func.func @transform_0(%arg0: i32) -> (i32, i32) {
    %c0_i32 = arith.constant 0 : i32
    %c0_i32_0 = arith.constant 0 : i32
    return %arg0, %c0_i32 : i32, i32
  }
  func.func @transform_1(%arg0: i32) -> (i32, i32) {
    %c0_i32 = arith.constant 0 : i32
    %c0_i32_0 = arith.constant 0 : i32
    %c0_i32_1 = arith.constant 0 : i32
    return %c0_i32, %c0_i32_0 : i32, i32
  }
  func.func @transform_2(%arg0: i32) -> (i32, i32) {
    %c0_i32 = arith.constant 0 : i32
    %c0_i32_0 = arith.constant 0 : i32
    return %arg0, %c0_i32 : i32, i32
  }
}

</mosaic_0001>

<llo_original>
// kernel: tpu_custom_call.1
$region0: #{tpu_custom_call.1}
  #allocation0 [shape = 'u32[]', space=smem, size = 0x4, offset = 0x4, fixed_abs, tag = 'smem constant byte address 0x4 - core index']
  #allocation1 [shape = 'u32[144,128]{1,0:T(1,128)}', space=vmem, size = 0x12000, scoped, tag = 'internal scratch']
  %s0 = inlined_call_operand.hbm [shape: f32[16,32], index: 0, kind: input, shape index: {}]
  %s1 = inlined_call_operand.hbm [shape: f32[1,32], index: 1, kind: input, shape index: {}]
  %s2 = inlined_call_operand.hbm [shape: f32[16,32], index: 2, kind: output, shape index: {}]
  %s3 = sld [smem:[#allocation0]]
  $region26: #{tpu_custom_call.1} parent=0
    _
  %s5 = ssub.s32 1, %s3
  %s6 = scalar_select 0, %s5, %s3
  $region1: #{tpu_custom_call.1} parent=0
    #allocation2 [shape = 'u8[8192]{0}', space=vmem, size = 0x2000, scoped, tag = 'input window, operand 0, single buffered']
    #allocation3 [shape = 's32[1]{0}', space=sflag, size = 0x4, scoped, tag = 'scoped memory for tpu_custom_call.1']
    #allocation4 [shape = 's32[1]{0}', space=sflag, size = 0x4, scoped, tag = 'scoped memory for tpu_custom_call.1']
    #allocation5 [shape = 'u8[512]{0}', space=vmem, size = 0x400, scoped, tag = 'input window, operand 1, single buffered']
    #allocation6 [shape = 's32[1]{0}', space=sflag, size = 0x4, scoped, tag = 'scoped memory for tpu_custom_call.1']
    #allocation7 [shape = 'u8[8192]{0}', space=vmem, size = 0x2000, scoped, tag = 'output window, operand 0, single buffered']
    %7 = vsyncpa [#allocation3], 0
    %8 = vsyncpa [#allocation6], 0
    %9 = vsyncpa [#allocation4], 0
    // Predicated region
    $region2: #{tpu_custom_call.1} parent=1 // pred_check
      _
    $region3: #{tpu_custom_call.1} parent=1 // pred_check_branch
      %11 = sbr.rel (0) target = $region5
    $region4: #{tpu_custom_call.1} parent=1 // pred_region
      %s13 = ssub.s32 256, 256
      %14 = vsyncadd [#allocation3], %s13
      %s15 = sshll.u32 [#allocation2], 4
      %s16 = int_to_ptr.vmem [resolvable:$true] %s15
      %21 = dma.hbm_to_vmem [thread:$0]  %s0, 256, %s16, [#allocation3], 128, 128, 8
    $region5: #{tpu_custom_call.1} parent=1 // pred_fallthru
      _
    // Predicated region
    $region6: #{tpu_custom_call.1} parent=1 // pred_check
      _
    $region7: #{tpu_custom_call.1} parent=1 // pred_check_branch
      %23 = sbr.rel (0) target = $region9
    $region8: #{tpu_custom_call.1} parent=1 // pred_region
      %s25 = ssub.s32 16, 16
      %26 = vsyncadd [#allocation6], %s25
      %s28 = sshll.u32 [#allocation5], 4
      %s29 = int_to_ptr.vmem [resolvable:$true] %s28
      %31 = dma.hbm_to_vmem [thread:$0]  %s1, 16, %s29, [#allocation6]
    $region9: #{tpu_custom_call.1} parent=1 // pred_fallthru
      _
    // Predicated region
    $region10: #{tpu_custom_call.1} parent=1 // pred_check
      _
    $region11: #{tpu_custom_call.1} parent=1 // pred_check_branch
      %33 = sbr.rel (0) target = $region13
    $region12: #{tpu_custom_call.1} parent=1 // pred_region
      %34 = dma.done [#allocation3], 256
    $region13: #{tpu_custom_call.1} parent=1 // pred_fallthru
      _
    // Predicated region
    $region14: #{tpu_custom_call.1} parent=1 // pred_check
      _
    $region15: #{tpu_custom_call.1} parent=1 // pred_check_branch
      %36 = sbr.rel (0) target = $region17
    $region16: #{tpu_custom_call.1} parent=1 // pred_region
      %37 = dma.done [#allocation6], 16
    $region17: #{tpu_custom_call.1} parent=1 // pred_fallthru
      _
    %v38 = vld [vmem:[#allocation2] sm:$0xff]
    %v39 = vld [vmem:[#allocation2 + $0x8] sm:$0xff]
    %v40 = vmul.f32 %v38, %v38
    %v41 = vmul.f32 %v39, %v39
    %vm42 = vcmask 261120
    %v43 = vsel %vm42, %v40, 0.0
    %44 = vadd.xlane.f32.xlu0 %v43
    %v45 = vpop.xlane.xlu0 %44
    %v46 = vsel %vm42, %v41, 0.0
    %47 = vadd.xlane.f32.xlu0 %v46
    %v48 = vpop.xlane.xlu0 %47
    %v49 = vrsqrt.pop %v45
    %v50 = vmul.f32 %v45, %v49
    %vm51 = vcmp.eq.f32.partialorder %v45, inf
    %v52 = vsel %vm51, %v45, %v50
    %vm53 = vcmp.eq.f32.partialorder %v45, 0.0
    %v54 = vand.u32 %v45, 2147483648
    %v55 = vsel %vm53, %v54, %v52
    %v56 = vrsqrt.pop %v48
    %v57 = vmul.f32 %v48, %v56
    %vm58 = vcmp.eq.f32.partialorder %v48, inf
    %v59 = vsel %vm58, %v48, %v57
    %vm60 = vcmp.eq.f32.partialorder %v48, 0.0
    %v61 = vand.u32 %v48, 2147483648
    %v62 = vsel %vm60, %v61, %v59
    %v63 = vmul.f32 %v55, 0.17677669
    %v64 = vmul.f32 %v62, 0.17677669
    %v65 = vadd.f32 %v63, 1e-08
    %v66 = vadd.f32 %v64, 1e-08
    %v67 = vrcp.pop %v65
    %v68 = vrcp.pop %v66
    %v69 = vmul.f32 %v38, %v67
    %v70 = vmul.f32 %v39, %v68
    %v71 = vld [vmem:[#allocation5] sm:$0x1]
    %v73 = vlaneseq
    %v74 = vshrl.u32 %v73, 7
    %v75 = vsub.s32 0, %v74
    %v76 = vrot.slane %v71, %v75
    %v78 = vmul.f32 %v69, %v76
    %v79 = vmul.f32 %v70, %v76
    %80 = vst.msk [vmem:[#allocation7] sm:$0xff] %vm42, %v78
    %81 = vst.msk [vmem:[#allocation7 + $0x8] sm:$0xff] %vm42, %v79
    // Predicated region
    $region18: #{tpu_custom_call.1} parent=1 // pred_check
      _
    $region19: #{tpu_custom_call.1} parent=1 // pred_check_branch
      %83 = sbr.rel (0) target = $region21
    $region20: #{tpu_custom_call.1} parent=1 // pred_region
      %s85 = ssub.s32 256, 256
      %86 = vsyncadd [#allocation4], %s85
      %s87 = sshll.u32 [#allocation7], 4
      %s88 = int_to_ptr.vmem [resolvable:$true] %s87
      %93 = dma.vmem_to_hbm [thread:$0]  %s88, 256, %s2, [#allocation4], 128, 128, 8
    $region21: #{tpu_custom_call.1} parent=1 // pred_fallthru
      _
    // Predicated region
    $region22: #{tpu_custom_call.1} parent=1 // pred_check
      _
    $region23: #{tpu_custom_call.1} parent=1 // pred_check_branch
      %95 = sbr.rel (0) target = $region25
    $region24: #{tpu_custom_call.1} parent=1 // pred_region
      %96 = dma.done [#allocation4], 256
    $region25: #{tpu_custom_call.1} parent=1 // pred_fallthru
      _
    %97 = vsyncpa [#allocation3], 1
    %98 = vsyncpa [#allocation6], 1
    %99 = vsyncpa [#allocation4], 1

</llo_original>
